<compile_context>
chip_gen: v6e
topology: v6e:2x2x1
jax: 0.10.0
libtpu: 0.0.40
codegen_flags: <defaults>
</compile_context>

<pallas_src>
import jax
import jax.numpy as jnp
from jax.experimental import pallas as pl
from jax.experimental.pallas import tpu as pltpu


# ---------------------------------------------------------------------------
# Kernel bodies
# ---------------------------------------------------------------------------
def _mlp_core(p_ref, x):
    """p_ref: (17,) f32 SMEM  [w1(2x3) row-major, b1(3), w2(3x2) row-major, b2(2)]
    x: (sb, 128) f32; lanes hold interleaved (x0, x1) pairs (64 samples / row).
    Returns (even_lane_mask, y0, y1); y0/y1 are valid on even lanes."""
    lane = jax.lax.broadcasted_iota(jnp.int32, x.shape, 1)
    even = (lane & 1) == 0

    # ---- fc1 + tanh, unrolled on the VPU (tanh on the EUP) ----
    h = []
    for j in range(3):
        # Per-lane weight: w1[0, j] on even (x0) lanes, w1[1, j] on odd (x1) lanes.
        w_lane = jnp.where(even, p_ref[j], p_ref[3 + j])
        t = x * w_lane
        # Pull the odd-lane partial product onto its even-lane partner:
        # roll by 127 == roll by -1 (mod 128)  =>  s[2i] = t[2i] + t[2i+1].
        s = t + pltpu.roll(t, shift=127, axis=1)
        h.append(jnp.tanh(s + p_ref[6 + j]))          # valid on even lanes

    # ---- fc2, unrolled (elementwise, stays per-lane) ----
    y0 = h[0] * p_ref[9]  + h[1] * p_ref[11] + h[2] * p_ref[13] + p_ref[15]
    y1 = h[0] * p_ref[10] + h[1] * p_ref[12] + h[2] * p_ref[14] + p_ref[16]
    return even, y0, y1


def _forward_kernel(p_ref, x_ref, logits_ref):
    """Logits-only variant: writes (sb, 128) f32, lanes interleaved (y0, y1)."""
    even, y0, y1 = _mlp_core(p_ref, x_ref[...])
    # even lane 2i <- y0(sample i); odd lane 2i+1 <- y1(sample i)  (roll by +1).
    logits_ref[...] = jnp.where(even, y0, pltpu.roll(y1, shift=1, axis=1))


def _predict_kernel(p_ref, x_ref, pred_ref):
    """Predict-only variant: int8 preds (valid on even lanes); logits stay in
    registers.  Softmax is monotonic so argmax(logits) == argmax(probs); ties
    map to class 1, matching the module's strict '>' test."""
    _, y0, y1 = _mlp_core(p_ref, x_ref[...])
    pred_ref[...] = jnp.where(y0 > y1, 0, 1).astype(jnp.int8)


# ---------------------------------------------------------------------------
# Host wrappers
# ---------------------------------------------------------------------------
_MAX_SB = 4096   # 4096 rows x 128 lanes x 4 B = 2 MiB f32 per input tile


def _pack_params(w1, b1, w2, b2):
    """Weights stored as (in_features, out_features) == W.T of nn.Linear."""
    return jnp.concatenate([
        w1.reshape(-1),   # 6
        b1.reshape(-1),   # 3
        w2.reshape(-1),   # 6
        b2.reshape(-1),   # 2
    ]).astype(jnp.float32)                      # (17,)


def _prep_input(x):
    """(B, 2) -> (rows_pad, 128) lane-dense buffer via a FREE contiguous reshape
    (no transpose pass).  Returns (x_lanes, rows_pad, sb_tile, b_pad)."""
    B = x.shape[0]
    rows = -(-B // 64)                    # 64 samples per 128-lane row
    rows_pad = -(-rows // 32) * 32        # sublane tiling (f32: 8, int8: 32)
    if rows_pad > _MAX_SB:
        rows_pad = -(-rows_pad // _MAX_SB) * _MAX_SB
        sb = _MAX_SB                      # ~2 MiB input/tile, grid >= 2 steps
    elif rows_pad > 32:
        rows_pad = -(-rows_pad // 64) * 64
        sb = rows_pad // 2                # 2 parallel tiles for v7x's two TCs
    else:
        sb = rows_pad                     # single small tile
    b_pad = rows_pad * 64
    x = x.astype(jnp.float32)
    if b_pad != B:
        x = jnp.pad(x, ((0, b_pad - B), (0, 0)))
    return x.reshape(rows_pad, 128), rows_pad, sb, b_pad


def _call(kernel, out_dtype, x, w1, b1, w2, b2):
    x_lanes, rows_pad, sb, b_pad = _prep_input(x)
    params = _pack_params(w1, b1, w2, b2)
    out = pl.pallas_call(
        kernel,
        out_shape=jax.ShapeDtypeStruct((rows_pad, 128), out_dtype),
        grid=(rows_pad // sb,),
        in_specs=[
            pl.BlockSpec(memory_space=pltpu.MemorySpace.SMEM),   # params (17,)
            pl.BlockSpec((sb, 128), lambda i: (i, 0)),           # x tile
        ],
        out_specs=pl.BlockSpec((sb, 128), lambda i: (i, 0)),
        compiler_params=pltpu.CompilerParams(
            dimension_semantics=("parallel",),
            vmem_limit_bytes=32 * 1024 * 1024),
    )(params, x_lanes)
    return out, b_pad


def net_forward(x, w1, b1, w2, b2):
    """Mirrors Net.forward: (B, 2) -> (B, 2) logits."""
    B = x.shape[0]
    out, b_pad = _call(_forward_kernel, jnp.float32, x, w1, b1, w2, b2)
    logits = out.reshape(b_pad, 2)        # free reshape back to row-major (B, 2)
    return logits if b_pad == B else logits[:B]


def net_predict(x, w1, b1, w2, b2):
    """Mirrors Net.predict: 0 if class-0 prob strictly greater, else 1."""
    B = x.shape[0]
    out, b_pad = _call(_predict_kernel, jnp.int8, x, w1, b1, w2, b2)
    # Even lanes hold per-sample preds -> column 0 after the free reshape.
    return out.reshape(b_pad, 2)[:B, 0].astype(jnp.int32)


# ---------------------------------------------------------------------------
# Reference + self-test
# ---------------------------------------------------------------------------
def _reference_forward(x, w1, b1, w2, b2):
    h = jnp.tanh(x @ w1 + b1)
    return h @ w2 + b2


if __name__ == "__main__":
    key = jax.random.PRNGKey(0)
    k_x, k_w1, k_b1, k_w2, k_b2 = jax.random.split(key, 5)

    # Deterministic synthetic parameters (PyTorch-like uniform fan-in init).
    # Weights stored as (in_features, out_features) == W.T of nn.Linear.
    bound1 = 1.0 / jnp.sqrt(2.0)
    bound2 = 1.0 / jnp.sqrt(3.0)
    w1 = jax.random.uniform(k_w1, (2, 3), jnp.float32, -bound1, bound1)
    b1 = jax.random.uniform(k_b1, (3,), jnp.float32, -bound1, bound1)
    w2 = jax.random.uniform(k_w2, (3, 2), jnp.float32, -bound2, bound2)
    b2 = jax.random.uniform(k_b2, (2,), jnp.float32, -bound2, bound2)

    for B in (8, 4096):      # small single-tile path and 2-step (grid=2) path
        x = jax.random.normal(jax.random.fold_in(k_x, B), (B, 2), jnp.float32)

        logits = net_forward(x, w1, b1, w2, b2)
        preds = net_predict(x, w1, b1, w2, b2)
        jax.block_until_ready(logits)
        jax.block_until_ready(preds)

        # Sanity check vs pure-JAX reference.
        y_ref = _reference_forward(x, w1, b1, w2, b2)
        assert logits.shape == (B, 2)
        assert jnp.allclose(logits, y_ref, atol=1e-5, rtol=1e-5), "logits mismatch"

        probs_ref = jax.nn.softmax(y_ref, axis=1)
        preds_ref = jnp.where(probs_ref[:, 0] > probs_ref[:, 1], 0, 1).astype(jnp.int32)
        assert jnp.array_equal(preds, preds_ref), "prediction mismatch"

    print("KERNEL_OK")
</pallas_src>

<mosaic_0001>
module attributes {stable_mosaic.version = 11 : i64} {
  func.func @_forward_kernel(%arg0: i32, %arg1: memref<17xf32, #tpu.memory_space<smem>>, %arg2: memref<32x128xf32, #tpu.memory_space<vmem>>, %arg3: memref<32x128xf32, #tpu.memory_space<vmem>>) attributes {dimension_semantics = [#tpu.dimension_semantics<parallel>], iteration_bounds = array<i64: 1>, scalar_prefetch = 0 : i64, scratch_operands = 0 : i64, tpu.core_type = #tpu.core_type<tc>, window_params = [{transform_indices = @transform_0, window_bounds = array<i64: 17>}, {transform_indices = @transform_1, window_bounds = array<i64: 32, 128>}, {transform_indices = @transform_2, window_bounds = array<i64: 32, 128>}]} {
    %c0 = arith.constant 0 : index
    %c0_0 = arith.constant 0 : index
    %0 = vector.load %arg2[%c0, %c0_0] : memref<32x128xf32, #tpu.memory_space<vmem>>, vector<32x128xf32>
    %1 = tpu.iota {dimensions = array<i32: 1>} : vector<32x128xi32>
    %c1_i32 = arith.constant 1 : i32
    %2 = vector.broadcast %c1_i32 : i32 to vector<32x128xi32>
    %3 = arith.andi %1, %2 : vector<32x128xi32>
    %c0_i32 = arith.constant 0 : i32
    %4 = vector.broadcast %c0_i32 : i32 to vector<32x128xi32>
    %5 = arith.cmpi eq, %3, %4 : vector<32x128xi32>
    %c0_1 = arith.constant 0 : index
    %6 = memref.load %arg1[%c0_1] : memref<17xf32, #tpu.memory_space<smem>>
    %c3 = arith.constant 3 : index
    %7 = memref.load %arg1[%c3] : memref<17xf32, #tpu.memory_space<smem>>
    %8 = vector.broadcast %6 : f32 to vector<32x128xf32>
    %9 = vector.broadcast %7 : f32 to vector<32x128xf32>
    %10 = arith.select %5, %8, %9 : vector<32x128xi1>, vector<32x128xf32>
    %11 = arith.mulf %0, %10 : vector<32x128xf32>
    %c127_i32 = arith.constant 127 : i32
    %12 = tpu.dynamic_rotate %11 by %c127_i32 dim 1 : vector<32x128xf32>, i32 -> vector<32x128xf32>
    %13 = arith.addf %11, %12 : vector<32x128xf32>
    %c6 = arith.constant 6 : index
    %14 = memref.load %arg1[%c6] : memref<17xf32, #tpu.memory_space<smem>>
    %15 = vector.broadcast %14 : f32 to vector<32x128xf32>
    %16 = arith.addf %13, %15 : vector<32x128xf32>
    %17 = math.tanh %16 : vector<32x128xf32>
    %c1 = arith.constant 1 : index
    %18 = memref.load %arg1[%c1] : memref<17xf32, #tpu.memory_space<smem>>
    %c4 = arith.constant 4 : index
    %19 = memref.load %arg1[%c4] : memref<17xf32, #tpu.memory_space<smem>>
    %20 = vector.broadcast %18 : f32 to vector<32x128xf32>
    %21 = vector.broadcast %19 : f32 to vector<32x128xf32>
    %22 = arith.select %5, %20, %21 : vector<32x128xi1>, vector<32x128xf32>
    %23 = arith.mulf %0, %22 : vector<32x128xf32>
    %c127_i32_2 = arith.constant 127 : i32
    %24 = tpu.dynamic_rotate %23 by %c127_i32_2 dim 1 : vector<32x128xf32>, i32 -> vector<32x128xf32>
    %25 = arith.addf %23, %24 : vector<32x128xf32>
    %c7 = arith.constant 7 : index
    %26 = memref.load %arg1[%c7] : memref<17xf32, #tpu.memory_space<smem>>
    %27 = vector.broadcast %26 : f32 to vector<32x128xf32>
    %28 = arith.addf %25, %27 : vector<32x128xf32>
    %29 = math.tanh %28 : vector<32x128xf32>
    %c2 = arith.constant 2 : index
    %30 = memref.load %arg1[%c2] : memref<17xf32, #tpu.memory_space<smem>>
    %c5 = arith.constant 5 : index
    %31 = memref.load %arg1[%c5] : memref<17xf32, #tpu.memory_space<smem>>
    %32 = vector.broadcast %30 : f32 to vector<32x128xf32>
    %33 = vector.broadcast %31 : f32 to vector<32x128xf32>
    %34 = arith.select %5, %32, %33 : vector<32x128xi1>, vector<32x128xf32>
    %35 = arith.mulf %0, %34 : vector<32x128xf32>
    %c127_i32_3 = arith.constant 127 : i32
    %36 = tpu.dynamic_rotate %35 by %c127_i32_3 dim 1 : vector<32x128xf32>, i32 -> vector<32x128xf32>
    %37 = arith.addf %35, %36 : vector<32x128xf32>
    %c8 = arith.constant 8 : index
    %38 = memref.load %arg1[%c8] : memref<17xf32, #tpu.memory_space<smem>>
    %39 = vector.broadcast %38 : f32 to vector<32x128xf32>
    %40 = arith.addf %37, %39 : vector<32x128xf32>
    %41 = math.tanh %40 : vector<32x128xf32>
    %c9 = arith.constant 9 : index
    %42 = memref.load %arg1[%c9] : memref<17xf32, #tpu.memory_space<smem>>
    %43 = vector.broadcast %42 : f32 to vector<32x128xf32>
    %44 = arith.mulf %17, %43 : vector<32x128xf32>
    %c11 = arith.constant 11 : index
    %45 = memref.load %arg1[%c11] : memref<17xf32, #tpu.memory_space<smem>>
    %46 = vector.broadcast %45 : f32 to vector<32x128xf32>
    %47 = arith.mulf %29, %46 : vector<32x128xf32>
    %48 = arith.addf %44, %47 : vector<32x128xf32>
    %c13 = arith.constant 13 : index
    %49 = memref.load %arg1[%c13] : memref<17xf32, #tpu.memory_space<smem>>
    %50 = vector.broadcast %49 : f32 to vector<32x128xf32>
    %51 = arith.mulf %41, %50 : vector<32x128xf32>
    %52 = arith.addf %48, %51 : vector<32x128xf32>
    %c15 = arith.constant 15 : index
    %53 = memref.load %arg1[%c15] : memref<17xf32, #tpu.memory_space<smem>>
    %54 = vector.broadcast %53 : f32 to vector<32x128xf32>
    %55 = arith.addf %52, %54 : vector<32x128xf32>
    %c10 = arith.constant 10 : index
    %56 = memref.load %arg1[%c10] : memref<17xf32, #tpu.memory_space<smem>>
    %57 = vector.broadcast %56 : f32 to vector<32x128xf32>
    %58 = arith.mulf %17, %57 : vector<32x128xf32>
    %c12 = arith.constant 12 : index
    %59 = memref.load %arg1[%c12] : memref<17xf32, #tpu.memory_space<smem>>
    %60 = vector.broadcast %59 : f32 to vector<32x128xf32>
    %61 = arith.mulf %29, %60 : vector<32x128xf32>
    %62 = arith.addf %58, %61 : vector<32x128xf32>
    %c14 = arith.constant 14 : index
    %63 = memref.load %arg1[%c14] : memref<17xf32, #tpu.memory_space<smem>>
    %64 = vector.broadcast %63 : f32 to vector<32x128xf32>
    %65 = arith.mulf %41, %64 : vector<32x128xf32>
    %66 = arith.addf %62, %65 : vector<32x128xf32>
    %c16 = arith.constant 16 : index
    %67 = memref.load %arg1[%c16] : memref<17xf32, #tpu.memory_space<smem>>
    %68 = vector.broadcast %67 : f32 to vector<32x128xf32>
    %69 = arith.addf %66, %68 : vector<32x128xf32>
    %c1_i32_4 = arith.constant 1 : i32
    %70 = tpu.dynamic_rotate %69 by %c1_i32_4 dim 1 : vector<32x128xf32>, i32 -> vector<32x128xf32>
    %71 = arith.select %5, %55, %70 : vector<32x128xi1>, vector<32x128xf32>
    %c0_5 = arith.constant 0 : index
    %c0_6 = arith.constant 0 : index
    %72 = vector.load %arg3[%c0_5, %c0_6] : memref<32x128xf32, #tpu.memory_space<vmem>>, vector<32x128xf32>
    tpu.vector_store %arg3[%c0_5, %c0_6], %71 {strides = array<i32>} : memref<32x128xf32, #tpu.memory_space<vmem>>, vector<32x128xf32>,
    return
  }
  func.func @transform_0(%arg0: i32) -> i32 {
    %c0_i32 = arith.constant 0 : i32
    %c0_i32_0 = arith.constant 0 : i32
    return %c0_i32 : i32
  }
  func.func @transform_1(%arg0: i32) -> (i32, i32) {
    %c0_i32 = arith.constant 0 : i32
    %c0_i32_0 = arith.constant 0 : i32
    return %arg0, %c0_i32 : i32, i32
  }
  func.func @transform_2(%arg0: i32) -> (i32, i32) {
    %c0_i32 = arith.constant 0 : i32
    %c0_i32_0 = arith.constant 0 : i32
    return %arg0, %c0_i32 : i32, i32
  }
}

</mosaic_0001>

<llo_original>
// kernel: tpu_custom_call.1
$region0: #{tpu_custom_call.1}
  #allocation0 [shape = 'u32[]', space=smem, size = 0x4, offset = 0x4, fixed_abs, tag = 'smem constant byte address 0x4 - core index']
  #allocation1 [shape = 'u32[144,128]{1,0:T(1,128)}', space=vmem, size = 0x12000, scoped, tag = 'internal scratch']
  %s0 = inlined_call_operand.hbm [shape: f32[17], index: 0, kind: input, shape index: {}]
  %s1 = inlined_call_operand.hbm [shape: f32[32,128], index: 1, kind: input, shape index: {}]
  %s2 = inlined_call_operand.hbm [shape: f32[32,128], index: 2, kind: output, shape index: {}]
  %s3 = sld [smem:[#allocation0]]
  $region26: #{tpu_custom_call.1} parent=0
    _
  %s5 = ssub.s32 1, %s3
  %s6 = scalar_select 0, %s5, %s3
  $region1: #{tpu_custom_call.1} parent=0
    #allocation2 [shape = 'u8[512]{0}', space=smem, size = 0x200, scoped, tag = 'input window, operand 0, single buffered']
    #allocation3 [shape = 's32[1]{0}', space=sflag, size = 0x4, scoped, tag = 'scoped memory for tpu_custom_call.1']
    #allocation4 [shape = 's32[1]{0}', space=sflag, size = 0x4, scoped, tag = 'scoped memory for tpu_custom_call.1']
    #allocation5 [shape = 's32[1]{0}', space=sflag, size = 0x4, scoped, tag = 'scoped memory for tpu_custom_call.1']
    #allocation6 [shape = 'u8[16384]{0}', space=vmem, size = 0x4000, scoped, tag = 'input window, operand 1, single buffered']
    #allocation7 [shape = 'u8[16384]{0}', space=vmem, size = 0x4000, scoped, tag = 'output window, operand 0, single buffered']
    %7 = vsyncpa [#allocation5], 0
    %8 = vsyncpa [#allocation3], 0
    %9 = vsyncpa [#allocation4], 0
    // Predicated region
    $region2: #{tpu_custom_call.1} parent=1 // pred_check
      _
    $region3: #{tpu_custom_call.1} parent=1 // pred_check_branch
      %11 = sbr.rel (0) target = $region5
    $region4: #{tpu_custom_call.1} parent=1 // pred_region
      %s13 = ssub.s32 16, 16
      %14 = vsyncadd [#allocation5], %s13
      %17 = dma.hbm_to_smem %s0, 16, [#allocation2], [#allocation5]
    $region5: #{tpu_custom_call.1} parent=1 // pred_fallthru
      _
    // Predicated region
    $region6: #{tpu_custom_call.1} parent=1 // pred_check
      _
    $region7: #{tpu_custom_call.1} parent=1 // pred_check_branch
      %19 = sbr.rel (0) target = $region9
    $region8: #{tpu_custom_call.1} parent=1 // pred_region
      %s21 = ssub.s32 512, 512
      %22 = vsyncadd [#allocation3], %s21
      %s23 = sshll.u32 [#allocation6], 4
      %s24 = int_to_ptr.vmem [resolvable:$true] %s23
      %29 = dma.hbm_to_vmem [thread:$0]  %s1, 512, %s24, [#allocation3], 128, 128, 8
    $region9: #{tpu_custom_call.1} parent=1 // pred_fallthru
      _
    // Predicated region
    $region10: #{tpu_custom_call.1} parent=1 // pred_check
      _
    $region11: #{tpu_custom_call.1} parent=1 // pred_check_branch
      %31 = sbr.rel (0) target = $region13
    $region12: #{tpu_custom_call.1} parent=1 // pred_region
      %32 = dma.done [#allocation5], 16
    $region13: #{tpu_custom_call.1} parent=1 // pred_fallthru
      _
    // Predicated region
    $region14: #{tpu_custom_call.1} parent=1 // pred_check
      _
    $region15: #{tpu_custom_call.1} parent=1 // pred_check_branch
      %34 = sbr.rel (0) target = $region17
    $region16: #{tpu_custom_call.1} parent=1 // pred_region
      %35 = dma.done [#allocation3], 512
    $region17: #{tpu_custom_call.1} parent=1 // pred_fallthru
      _
    %36 = sfence
    %v37 = vld [vmem:[#allocation6] sm:$0xff]
    %v38 = vld [vmem:[#allocation6 + $0x8] sm:$0xff]
    %v39 = vld [vmem:[#allocation6 + $0x10] sm:$0xff]
    %v40 = vld [vmem:[#allocation6 + $0x18] sm:$0xff]
    %v41 = vlaneseq
    %v42 = vand.u32 %v41, 127
    %v43 = vand.u32 %v42, 1
    %vm44 = vcmp.eq.s32.totalorder %v43, 0
    %s45 = sld [smem:[#allocation2]]
    %s46 = sld [smem:[#allocation2 + $0x3]]
    %v47 = vstv %s45
    %v48 = vstv %s46
    %v49 = vsel %vm44, %v47, %v48
    %v50 = vmul.f32 %v37, %v49
    %v51 = vmul.f32 %v38, %v49
    %v52 = vmul.f32 %v39, %v49
    %v53 = vmul.f32 %v40, %v49
    %54 = vrot.lane.b32.xlu0 %v50, 127
    %v55 = vpop.permute.xlu0 %54
    %56 = vrot.lane.b32.xlu0 %v51, 127
    %v57 = vpop.permute.xlu0 %56
    %58 = vrot.lane.b32.xlu0 %v52, 127
    %v59 = vpop.permute.xlu0 %58
    %60 = vrot.lane.b32.xlu0 %v53, 127
    %v61 = vpop.permute.xlu0 %60
    %v62 = vadd.f32 %v50, %v55
    %v63 = vadd.f32 %v51, %v57
    %v64 = vadd.f32 %v52, %v59
    %v65 = vadd.f32 %v53, %v61
    %s66 = sld [smem:[#allocation2 + $0x6]]
    %v67 = vstv %s66
    %v68 = vadd.f32 %v62, %v67
    %v69 = vadd.f32 %v63, %v67
    %v70 = vadd.f32 %v64, %v67
    %v71 = vadd.f32 %v65, %v67
    %v72 = vtanh.pop %v68
    %v73 = vtanh.pop %v69
    %v74 = vtanh.pop %v70
    %v75 = vtanh.pop %v71
    %s76 = sld [smem:[#allocation2 + $0x1]]
    %s77 = sld [smem:[#allocation2 + $0x4]]
    %v78 = vstv %s76
    %v79 = vstv %s77
    %v80 = vsel %vm44, %v78, %v79
    %v81 = vmul.f32 %v37, %v80
    %v82 = vmul.f32 %v38, %v80
    %v83 = vmul.f32 %v39, %v80
    %v84 = vmul.f32 %v40, %v80
    %85 = vrot.lane.b32.xlu0 %v81, 127
    %v86 = vpop.permute.xlu0 %85
    %87 = vrot.lane.b32.xlu0 %v82, 127
    %v88 = vpop.permute.xlu0 %87
    %89 = vrot.lane.b32.xlu0 %v83, 127
    %v90 = vpop.permute.xlu0 %89
    %91 = vrot.lane.b32.xlu0 %v84, 127
    %v92 = vpop.permute.xlu0 %91
    %v93 = vadd.f32 %v81, %v86
    %v94 = vadd.f32 %v82, %v88
    %v95 = vadd.f32 %v83, %v90
    %v96 = vadd.f32 %v84, %v92
    %s97 = sld [smem:[#allocation2 + $0x7]]
    %v98 = vstv %s97
    %v99 = vadd.f32 %v93, %v98
    %v100 = vadd.f32 %v94, %v98
    %v101 = vadd.f32 %v95, %v98
    %v102 = vadd.f32 %v96, %v98
    %v103 = vtanh.pop %v99
    %v104 = vtanh.pop %v100
    %v105 = vtanh.pop %v101
    %v106 = vtanh.pop %v102
    %s107 = sld [smem:[#allocation2 + $0x2]]
    %s108 = sld [smem:[#allocation2 + $0x5]]
    %v109 = vstv %s107
    %v110 = vstv %s108
    %v111 = vsel %vm44, %v109, %v110
    %v112 = vmul.f32 %v37, %v111
    %v113 = vmul.f32 %v38, %v111
    %v114 = vmul.f32 %v39, %v111
    %v115 = vmul.f32 %v40, %v111
    %116 = vrot.lane.b32.xlu0 %v112, 127
    %v117 = vpop.permute.xlu0 %116
    %118 = vrot.lane.b32.xlu0 %v113, 127
    %v119 = vpop.permute.xlu0 %118
    %120 = vrot.lane.b32.xlu0 %v114, 127
    %v121 = vpop.permute.xlu0 %120
    %122 = vrot.lane.b32.xlu0 %v115, 127
    %v123 = vpop.permute.xlu0 %122
    %v124 = vadd.f32 %v112, %v117
    %v125 = vadd.f32 %v113, %v119
    %v126 = vadd.f32 %v114, %v121
    %v127 = vadd.f32 %v115, %v123
    %s128 = sld [smem:[#allocation2 + $0x8]]
    %v129 = vstv %s128
    %v130 = vadd.f32 %v124, %v129
    %v131 = vadd.f32 %v125, %v129
    %v132 = vadd.f32 %v126, %v129
    %v133 = vadd.f32 %v127, %v129
    %v134 = vtanh.pop %v130
    %v135 = vtanh.pop %v131
    %v136 = vtanh.pop %v132
    %v137 = vtanh.pop %v133
    %s138 = sld [smem:[#allocation2 + $0x9]]
    %v139 = vstv %s138
    %v140 = vmul.f32 %v72, %v139
    %v141 = vmul.f32 %v73, %v139
    %v142 = vmul.f32 %v74, %v139
    %v143 = vmul.f32 %v75, %v139
    %s144 = sld [smem:[#allocation2 + $0xb]]
    %v145 = vstv %s144
    %v146 = vmul.f32 %v103, %v145
    %v147 = vmul.f32 %v104, %v145
    %v148 = vmul.f32 %v105, %v145
    %v149 = vmul.f32 %v106, %v145
    %v150 = vadd.f32 %v140, %v146
    %v151 = vadd.f32 %v141, %v147
    %v152 = vadd.f32 %v142, %v148
    %v153 = vadd.f32 %v143, %v149
    %s154 = sld [smem:[#allocation2 + $0xd]]
    %v155 = vstv %s154
    %v156 = vmul.f32 %v134, %v155
    %v157 = vmul.f32 %v135, %v155
    %v158 = vmul.f32 %v136, %v155
    %v159 = vmul.f32 %v137, %v155
    %v160 = vadd.f32 %v150, %v156
    %v161 = vadd.f32 %v151, %v157
    %v162 = vadd.f32 %v152, %v158
    %v163 = vadd.f32 %v153, %v159
    %s164 = sld [smem:[#allocation2 + $0xf]]
    %v165 = vstv %s164
    %v166 = vadd.f32 %v160, %v165
    %v167 = vadd.f32 %v161, %v165
    %v168 = vadd.f32 %v162, %v165
    %v169 = vadd.f32 %v163, %v165
    %s170 = sld [smem:[#allocation2 + $0xa]]
    %v171 = vstv %s170
    %v172 = vmul.f32 %v72, %v171
    %v173 = vmul.f32 %v73, %v171
    %v174 = vmul.f32 %v74, %v171
    %v175 = vmul.f32 %v75, %v171
    %s176 = sld [smem:[#allocation2 + $0xc]]
    %v177 = vstv %s176
    %v178 = vmul.f32 %v103, %v177
    %v179 = vmul.f32 %v104, %v177
    %v180 = vmul.f32 %v105, %v177
    %v181 = vmul.f32 %v106, %v177
    %v182 = vadd.f32 %v172, %v178
    %v183 = vadd.f32 %v173, %v179
    %v184 = vadd.f32 %v174, %v180
    %v185 = vadd.f32 %v175, %v181
    %s186 = sld [smem:[#allocation2 + $0xe]]
    %v187 = vstv %s186
    %v188 = vmul.f32 %v134, %v187
    %v189 = vmul.f32 %v135, %v187
    %v190 = vmul.f32 %v136, %v187
    %v191 = vmul.f32 %v137, %v187
    %v192 = vadd.f32 %v182, %v188
    %v193 = vadd.f32 %v183, %v189
    %v194 = vadd.f32 %v184, %v190
    %v195 = vadd.f32 %v185, %v191
    %s196 = sld [smem:[#allocation2 + $0x10]]
    %v197 = vstv %s196
    %v198 = vadd.f32 %v192, %v197
    %v199 = vadd.f32 %v193, %v197
    %v200 = vadd.f32 %v194, %v197
    %v201 = vadd.f32 %v195, %v197
    %202 = vrot.lane.b32.xlu0 %v198, 1
    %v203 = vpop.permute.xlu0 %202
    %204 = vrot.lane.b32.xlu0 %v199, 1
    %v205 = vpop.permute.xlu0 %204
    %206 = vrot.lane.b32.xlu0 %v200, 1
    %v207 = vpop.permute.xlu0 %206
    %208 = vrot.lane.b32.xlu0 %v201, 1
    %v209 = vpop.permute.xlu0 %208
    %v210 = vsel %vm44, %v166, %v203
    %v211 = vsel %vm44, %v167, %v205
    %v212 = vsel %vm44, %v168, %v207
    %v213 = vsel %vm44, %v169, %v209
    %214 = vst [vmem:[#allocation7] sm:$0xff] %v210
    %215 = vst [vmem:[#allocation7 + $0x8] sm:$0xff] %v211
    %216 = vst [vmem:[#allocation7 + $0x10] sm:$0xff] %v212
    %217 = vst [vmem:[#allocation7 + $0x18] sm:$0xff] %v213
    // Predicated region
    $region18: #{tpu_custom_call.1} parent=1 // pred_check
      _
    $region19: #{tpu_custom_call.1} parent=1 // pred_check_branch
      %219 = sbr.rel (0) target = $region21
    $region20: #{tpu_custom_call.1} parent=1 // pred_region
      %s221 = ssub.s32 512, 512
      %222 = vsyncadd [#allocation4], %s221
      %s223 = sshll.u32 [#allocation7], 4
      %s224 = int_to_ptr.vmem [resolvable:$true] %s223
      %229 = dma.vmem_to_hbm [thread:$0]  %s224, 512, %s2, [#allocation4], 128, 128, 8
    $region21: #{tpu_custom_call.1} parent=1 // pred_fallthru
      _
    // Predicated region
    $region22: #{tpu_custom_call.1} parent=1 // pred_check
      _
    $region23: #{tpu_custom_call.1} parent=1 // pred_check_branch
      %231 = sbr.rel (0) target = $region25
    $region24: #{tpu_custom_call.1} parent=1 // pred_region
      %232 = dma.done [#allocation4], 512
    $region25: #{tpu_custom_call.1} parent=1 // pred_fallthru
      _
    %233 = vsyncpa [#allocation3], 1
    %234 = vsyncpa [#allocation4], 1
    %235 = vsyncpa [#allocation5], 1

</llo_original>
